<compile_context>
chip_gen: v7x
topology: tpu7x:2x2x1
jax: 0.10.0
libtpu: 0.0.40
codegen_flags: <defaults>
</compile_context>

<pallas_src>
import functools

import jax
import jax.numpy as jnp
from jax.experimental import pallas as pl
from jax.experimental.pallas import tpu as pltpu

_PAD = 128        # lane padding for every feature dim (D_in, hidden, D_out)
_BIAS_ROWS = 8    # each bias section padded to a full sublane tile
_SLAB_ROWS = 3 * _PAD + 3 * _BIAS_ROWS   # 408 rows x 128 lanes


def _mish(x):
    # Mish(x) = x * tanh(softplus(x)); tanh(softplus(x)) = n/(n+2) with n = e*(e+2), e = exp(x).
    # Keep PyTorch's softplus threshold semantics: pass x straight through for x > 20
    # (also keeps exp() clamped so it never overflows in f32).
    e = jnp.exp(jnp.minimum(x, 20.0))
    n = e * (e + 2.0)
    y = x * n * pl.reciprocal(n + 2.0, approx=True)
    return jnp.where(x > 20.0, x, y)


def _policy_kernel(x_ref, p_ref, o_ref, *, offs, d_out):
    o_w1, o_b1, o_w2, o_b2, o_w3, o_b3 = offs
    x = x_ref[...]                                         # (TB, 128), zero-padded in K

    w1 = p_ref[o_w1:o_w1 + _PAD, :]                        # (128, 128)
    b1 = p_ref[o_b1:o_b1 + 1, :]                           # (1, 128)
    h = _mish(jnp.dot(x, w1, preferred_element_type=jnp.float32) + b1)

    w2 = p_ref[o_w2:o_w2 + _PAD, :]
    b2 = p_ref[o_b2:o_b2 + 1, :]
    h = _mish(jnp.dot(h, w2, preferred_element_type=jnp.float32) + b2)

    w3 = p_ref[o_w3:o_w3 + _PAD, :]
    b3 = p_ref[o_b3:o_b3 + 1, :]
    logits = jnp.dot(h, w3, preferred_element_type=jnp.float32) + b3   # (TB, 128)

    # LogSoftmax over dim=1; only the first d_out lanes are real classes (rest are padding).
    lane = jax.lax.broadcasted_iota(jnp.int32, logits.shape, 1)
    mask = lane < d_out
    neg_inf = jnp.float32(-jnp.inf)
    m = jnp.max(jnp.where(mask, logits, neg_inf), axis=1, keepdims=True)
    s = logits - m
    lse = jnp.log(jnp.sum(jnp.exp(jnp.where(mask, s, neg_inf)), axis=1, keepdims=True))
    # Padded lanes hold garbage; they are sliced off in the wrapper. Store is full-lane (unmasked).
    o_ref[...] = (s - lse).astype(o_ref.dtype)


def _pack_params(params):
    """Pack (w1,b1,w2,b2,w3,b3) into one zero-padded (408, 128) f32 slab + static row offsets."""
    w1, b1, w2, b2, w3, b3 = params
    d_in, h = w1.shape
    d_out = w3.shape[1]
    assert d_in <= _PAD and h <= _PAD and d_out <= _PAD

    slab = jnp.zeros((_SLAB_ROWS, _PAD), jnp.float32)
    offs = []
    row = 0
    for mat, rows_alloc in (
        (w1, _PAD), (b1.reshape(1, -1), _BIAS_ROWS),
        (w2, _PAD), (b2.reshape(1, -1), _BIAS_ROWS),
        (w3, _PAD), (b3.reshape(1, -1), _BIAS_ROWS),
    ):
        offs.append(row)
        slab = slab.at[row:row + mat.shape[0], :mat.shape[1]].set(mat.astype(jnp.float32))
        row += rows_alloc
    return slab, tuple(offs)


def policy_forward(x, params):
    B, d_in = x.shape
    h = params[0].shape[1]
    d_out = params[4].shape[1]

    slab, offs = _pack_params(params)

    # Batch tile: multiple of 8 sublanes; with "parallel" semantics large batches shard across cores.
    tb = min(pl.cdiv(B, 8) * 8, 256)
    bp = pl.cdiv(B, tb) * tb
    xp = jnp.zeros((bp, _PAD), jnp.float32).at[:B, :d_in].set(x.astype(jnp.float32))

    kernel = functools.partial(_policy_kernel, offs=offs, d_out=d_out)

    cost = pl.CostEstimate(
        flops=2 * B * (d_in * h + h * h + h * d_out),
        transcendentals=B * (4 * h + d_out + 1),
        bytes_accessed=int(xp.size * 4 + slab.size * 4 + bp * _PAD * 4),
    )

    out_padded = pl.pallas_call(
        kernel,
        out_shape=jax.ShapeDtypeStruct((bp, _PAD), jnp.float32),
        grid=(bp // tb,),
        in_specs=[
            pl.BlockSpec((tb, _PAD), lambda i: (i, 0)),           # batch tile of x
            pl.BlockSpec((_SLAB_ROWS, _PAD), lambda i: (0, 0)),   # all params: one DMA, stays resident
        ],
        out_specs=pl.BlockSpec((tb, _PAD), lambda i: (i, 0)),
        compiler_params=pltpu.CompilerParams(
            dimension_semantics=("parallel",),
        ),
        cost_estimate=cost,
    )(xp, slab)

    return out_padded[:B, :d_out]


def init_params(key, input_size, hidden, output_size):
    # Deterministic init mimicking PyTorch Linear default: U(-1/sqrt(fan_in), 1/sqrt(fan_in)).
    ks = jax.random.split(key, 6)

    def uni(k, shape, fan_in):
        bound = 1.0 / jnp.sqrt(jnp.float32(fan_in))
        return jax.random.uniform(k, shape, jnp.float32, -bound, bound)

    w1 = uni(ks[0], (input_size, hidden), input_size)
    b1 = uni(ks[1], (1, hidden), input_size)
    w2 = uni(ks[2], (hidden, hidden), hidden)
    b2 = uni(ks[3], (1, hidden), hidden)
    w3 = uni(ks[4], (hidden, output_size), hidden)
    b3 = uni(ks[5], (1, output_size), hidden)
    return (w1, b1, w2, b2, w3, b3)


def _policy_ref(x, params):
    # Pure-JAX reference matching the PyTorch module (exact softplus/tanh Mish).
    w1, b1, w2, b2, w3, b3 = params

    def mish(v):
        sp = jnp.where(v > 20.0, v, jnp.log1p(jnp.exp(jnp.minimum(v, 20.0))))
        return v * jnp.tanh(sp)

    hh = mish(x @ w1 + b1)
    hh = mish(hh @ w2 + b2)
    logits = hh @ w3 + b3
    return jax.nn.log_softmax(logits, axis=1)


if __name__ == "__main__":
    # CartPole-like sizes: state dim = 4, actions = 2, small batch.
    B, INPUT_SIZE, HIDDEN, OUTPUT_SIZE = 8, 4, 64, 2

    key = jax.random.PRNGKey(0)
    k_x, k_p = jax.random.split(key)
    x = jax.random.normal(k_x, (B, INPUT_SIZE), jnp.float32)
    params = init_params(k_p, INPUT_SIZE, HIDDEN, OUTPUT_SIZE)

    out = policy_forward(x, params)
    jax.block_until_ready(out)

    assert out.shape == (B, OUTPUT_SIZE)
    # Exact property: log-probs exponentiate+sum to 1 per row (independent of mish approximation).
    row_sums = jnp.sum(jnp.exp(out), axis=1)
    assert bool(jnp.all(jnp.abs(row_sums - 1.0) < 1e-4))
    # Match the pure-JAX reference (loose tol covers the approx reciprocal inside Mish).
    ref = _policy_ref(x, params)
    assert bool(jnp.all(jnp.abs(out - ref) < 2e-2))

    print("KERNEL_OK")
</pallas_src>

<mosaic_0001>
module attributes {stable_mosaic.version = 11 : i64} {
  func.func @_policy_kernel(%arg0: i32, %arg1: memref<8x128xf32, #tpu.memory_space<vmem>>, %arg2: memref<408x128xf32, #tpu.memory_space<vmem>>, %arg3: memref<8x128xf32, #tpu.memory_space<vmem>>) attributes {dimension_semantics = [#tpu.dimension_semantics<parallel>], iteration_bounds = array<i64: 1>, scalar_prefetch = 0 : i64, scratch_operands = 0 : i64, tpu.core_type = #tpu.core_type<tc>, window_params = [{transform_indices = @transform_0, window_bounds = array<i64: 8, 128>}, {pipeline_mode = #tpu.pipeline_mode<synchronous>, transform_indices = @transform_1, window_bounds = array<i64: 408, 128>}, {transform_indices = @transform_2, window_bounds = array<i64: 8, 128>}]} {
    %c0 = arith.constant 0 : index
    %c0_0 = arith.constant 0 : index
    %0 = vector.load %arg1[%c0, %c0_0] : memref<8x128xf32, #tpu.memory_space<vmem>>, vector<8x128xf32>
    %c0_1 = arith.constant 0 : index
    %c0_2 = arith.constant 0 : index
    %1 = vector.load %arg2[%c0_1, %c0_2] : memref<408x128xf32, #tpu.memory_space<vmem>>, vector<128x128xf32>
    %c128 = arith.constant 128 : index
    %c0_3 = arith.constant 0 : index
    %2 = vector.load %arg2[%c128, %c0_3] : memref<408x128xf32, #tpu.memory_space<vmem>>, vector<1x128xf32>
    %cst = arith.constant dense<0.000000e+00> : vector<8x128xf32>
    %3 = tpu.matmul %0, %1, %cst {dimension_numbers = #tpu.dot_dimension_numbers<[1], [0], [0], [1], [0, 0, 1, 1], [], []>} : vector<8x128xf32>, vector<128x128xf32>, vector<8x128xf32> -> vector<8x128xf32>
    %4 = vector.broadcast %2 : vector<1x128xf32> to vector<8x128xf32>
    %5 = arith.addf %3, %4 : vector<8x128xf32>
    %cst_4 = arith.constant 2.000000e+01 : f32
    %6 = vector.broadcast %cst_4 : f32 to vector<8x128xf32>
    %7 = arith.minimumf %5, %6 : vector<8x128xf32>
    %8 = math.exp %7 : vector<8x128xf32>
    %cst_5 = arith.constant 2.000000e+00 : f32
    %9 = vector.broadcast %cst_5 : f32 to vector<8x128xf32>
    %10 = arith.addf %8, %9 : vector<8x128xf32>
    %11 = arith.mulf %8, %10 : vector<8x128xf32>
    %12 = arith.mulf %5, %11 : vector<8x128xf32>
    %cst_6 = arith.constant 2.000000e+00 : f32
    %13 = vector.broadcast %cst_6 : f32 to vector<8x128xf32>
    %14 = arith.addf %11, %13 : vector<8x128xf32>
    %15 = tpu.reciprocal %14 {approx = true} : vector<8x128xf32> -> vector<8x128xf32>
    %16 = arith.mulf %12, %15 : vector<8x128xf32>
    %cst_7 = arith.constant 2.000000e+01 : f32
    %17 = vector.broadcast %cst_7 : f32 to vector<8x128xf32>
    %18 = arith.cmpf ogt, %5, %17 : vector<8x128xf32>
    %19 = arith.select %18, %5, %16 : vector<8x128xi1>, vector<8x128xf32>
    %c136 = arith.constant 136 : index
    %c0_8 = arith.constant 0 : index
    %20 = vector.load %arg2[%c136, %c0_8] : memref<408x128xf32, #tpu.memory_space<vmem>>, vector<128x128xf32>
    %c264 = arith.constant 264 : index
    %c0_9 = arith.constant 0 : index
    %21 = vector.load %arg2[%c264, %c0_9] : memref<408x128xf32, #tpu.memory_space<vmem>>, vector<1x128xf32>
    %cst_10 = arith.constant dense<0.000000e+00> : vector<8x128xf32>
    %22 = tpu.matmul %19, %20, %cst_10 {dimension_numbers = #tpu.dot_dimension_numbers<[1], [0], [0], [1], [0, 0, 1, 1], [], []>} : vector<8x128xf32>, vector<128x128xf32>, vector<8x128xf32> -> vector<8x128xf32>
    %23 = vector.broadcast %21 : vector<1x128xf32> to vector<8x128xf32>
    %24 = arith.addf %22, %23 : vector<8x128xf32>
    %cst_11 = arith.constant 2.000000e+01 : f32
    %25 = vector.broadcast %cst_11 : f32 to vector<8x128xf32>
    %26 = arith.minimumf %24, %25 : vector<8x128xf32>
    %27 = math.exp %26 : vector<8x128xf32>
    %cst_12 = arith.constant 2.000000e+00 : f32
    %28 = vector.broadcast %cst_12 : f32 to vector<8x128xf32>
    %29 = arith.addf %27, %28 : vector<8x128xf32>
    %30 = arith.mulf %27, %29 : vector<8x128xf32>
    %31 = arith.mulf %24, %30 : vector<8x128xf32>
    %cst_13 = arith.constant 2.000000e+00 : f32
    %32 = vector.broadcast %cst_13 : f32 to vector<8x128xf32>
    %33 = arith.addf %30, %32 : vector<8x128xf32>
    %34 = tpu.reciprocal %33 {approx = true} : vector<8x128xf32> -> vector<8x128xf32>
    %35 = arith.mulf %31, %34 : vector<8x128xf32>
    %cst_14 = arith.constant 2.000000e+01 : f32
    %36 = vector.broadcast %cst_14 : f32 to vector<8x128xf32>
    %37 = arith.cmpf ogt, %24, %36 : vector<8x128xf32>
    %38 = arith.select %37, %24, %35 : vector<8x128xi1>, vector<8x128xf32>
    %c272 = arith.constant 272 : index
    %c0_15 = arith.constant 0 : index
    %39 = vector.load %arg2[%c272, %c0_15] : memref<408x128xf32, #tpu.memory_space<vmem>>, vector<128x128xf32>
    %c400 = arith.constant 400 : index
    %c0_16 = arith.constant 0 : index
    %40 = vector.load %arg2[%c400, %c0_16] : memref<408x128xf32, #tpu.memory_space<vmem>>, vector<1x128xf32>
    %cst_17 = arith.constant dense<0.000000e+00> : vector<8x128xf32>
    %41 = tpu.matmul %38, %39, %cst_17 {dimension_numbers = #tpu.dot_dimension_numbers<[1], [0], [0], [1], [0, 0, 1, 1], [], []>} : vector<8x128xf32>, vector<128x128xf32>, vector<8x128xf32> -> vector<8x128xf32>
    %42 = vector.broadcast %40 : vector<1x128xf32> to vector<8x128xf32>
    %43 = arith.addf %41, %42 : vector<8x128xf32>
    %44 = tpu.iota {dimensions = array<i32: 1>} : vector<8x128xi32>
    %c2_i32 = arith.constant 2 : i32
    %45 = vector.broadcast %c2_i32 : i32 to vector<8x128xi32>
    %46 = arith.cmpi slt, %44, %45 : vector<8x128xi32>
    %cst_18 = arith.constant 0xFF800000 : f32
    %47 = vector.broadcast %cst_18 : f32 to vector<8x128xf32>
    %48 = arith.select %46, %43, %47 : vector<8x128xi1>, vector<8x128xf32>
    %cst_19 = arith.constant dense<0xFF800000> : vector<8xf32>
    %49 = vector.multi_reduction <maximumf>, %48, %cst_19 [1] : vector<8x128xf32> to vector<8xf32>
    %50 = vector.shape_cast %49 : vector<8xf32> to vector<8x1xf32>
    %51 = vector.broadcast %50 : vector<8x1xf32> to vector<8x128xf32>
    %52 = arith.subf %43, %51 : vector<8x128xf32>
    %cst_20 = arith.constant 0xFF800000 : f32
    %53 = vector.broadcast %cst_20 : f32 to vector<8x128xf32>
    %54 = arith.select %46, %52, %53 : vector<8x128xi1>, vector<8x128xf32>
    %55 = math.exp %54 : vector<8x128xf32>
    %cst_21 = arith.constant dense<0.000000e+00> : vector<8xf32>
    %56 = vector.multi_reduction <add>, %55, %cst_21 [1] : vector<8x128xf32> to vector<8xf32>
    %57 = vector.shape_cast %56 : vector<8xf32> to vector<8x1xf32>
    %58 = math.log %57 : vector<8x1xf32>
    %59 = vector.broadcast %58 : vector<8x1xf32> to vector<8x128xf32>
    %60 = arith.subf %52, %59 : vector<8x128xf32>
    %c0_22 = arith.constant 0 : index
    %c0_23 = arith.constant 0 : index
    %61 = vector.load %arg3[%c0_22, %c0_23] : memref<8x128xf32, #tpu.memory_space<vmem>>, vector<8x128xf32>
    tpu.vector_store %arg3[%c0_22, %c0_23], %60 {strides = array<i32>} : memref<8x128xf32, #tpu.memory_space<vmem>>, vector<8x128xf32>,
    return
  }
  func.func @transform_0(%arg0: i32) -> (i32, i32) {
    %c0_i32 = arith.constant 0 : i32
    %c0_i32_0 = arith.constant 0 : i32
    return %arg0, %c0_i32 : i32, i32
  }
  func.func @transform_1(%arg0: i32) -> (i32, i32) {
    %c0_i32 = arith.constant 0 : i32
    %c0_i32_0 = arith.constant 0 : i32
    %c0_i32_1 = arith.constant 0 : i32
    return %c0_i32, %c0_i32_0 : i32, i32
  }
  func.func @transform_2(%arg0: i32) -> (i32, i32) {
    %c0_i32 = arith.constant 0 : i32
    %c0_i32_0 = arith.constant 0 : i32
    return %arg0, %c0_i32 : i32, i32
  }
}

</mosaic_0001>

<llo_original>
// kernel: tpu_custom_call.1
$region0: #{tpu_custom_call.1}
  #allocation0 [shape = 'u32[]', space=smem, size = 0x4, offset = 0x4, fixed_abs, tag = 'smem constant byte address 0x4 - core index']
  #allocation1 [shape = 'u32[144,128]{1,0:T(1,128)}', space=vmem, size = 0x12000, scoped, tag = 'internal scratch']
  %s0 = inlined_call_operand.hbm [shape: f32[8,128], index: 0, kind: input, shape index: {}]
  %s1 = inlined_call_operand.hbm [shape: f32[408,128], index: 1, kind: input, shape index: {}]
  %s2 = inlined_call_operand.hbm [shape: f32[8,128], index: 2, kind: output, shape index: {}]
  %s3 = sld [smem:[#allocation0]]
  $region26: #{tpu_custom_call.1} parent=0
    _
  %s5 = ssub.s32 1, %s3
  %s6 = scalar_select 0, %s5, %s3
  $region1: #{tpu_custom_call.1} parent=0
    #allocation2 [shape = 'u8[4096]{0}', space=vmem, size = 0x1000, scoped, tag = 'input window, operand 0, single buffered']
    #allocation3 [shape = 's32[1]{0}', space=sflag, size = 0x4, scoped, tag = 'scoped memory for tpu_custom_call.1']
    #allocation4 [shape = 's32[1]{0}', space=sflag, size = 0x4, scoped, tag = 'scoped memory for tpu_custom_call.1']
    #allocation5 [shape = 'u8[208896]{0}', space=vmem, size = 0x33000, scoped, tag = 'input window, operand 1, single buffered']
    #allocation6 [shape = 's32[1]{0}', space=sflag, size = 0x4, scoped, tag = 'scoped memory for tpu_custom_call.1']
    #allocation7 [shape = 'u8[4096]{0}', space=vmem, size = 0x1000, scoped, tag = 'output window, operand 0, single buffered']
    %7 = vsyncpa [#allocation3], 0
    %8 = vsyncpa [#allocation6], 0
    %9 = vsyncpa [#allocation4], 0
    // Predicated region
    $region2: #{tpu_custom_call.1} parent=1 // pred_check
      _
    $region3: #{tpu_custom_call.1} parent=1 // pred_check_branch
      %11 = sbr.rel (0) target = $region5
    $region4: #{tpu_custom_call.1} parent=1 // pred_region
      %s13 = ssub.s32 128, 128
      %14 = vsyncadd [#allocation3], %s13
      %s16 = sshll.u32 [#allocation2], 4
      %s17 = int_to_ptr.vmem [resolvable:$true] %s16
      %19 = dma.hbm_to_vmem [thread:$0]  %s0, 128, %s17, [#allocation3]
    $region5: #{tpu_custom_call.1} parent=1 // pred_fallthru
      _
    // Predicated region
    $region6: #{tpu_custom_call.1} parent=1 // pred_check
      _
    $region7: #{tpu_custom_call.1} parent=1 // pred_check_branch
      %21 = sbr.rel (0) target = $region9
    $region8: #{tpu_custom_call.1} parent=1 // pred_region
      %s23 = ssub.s32 6528, 6528
      %24 = vsyncadd [#allocation6], %s23
      %s25 = sshll.u32 [#allocation5], 4
      %s26 = int_to_ptr.vmem [resolvable:$true] %s25
      %31 = dma.hbm_to_vmem [thread:$0]  %s1, 6528, %s26, [#allocation6], 128, 128, 8
    $region9: #{tpu_custom_call.1} parent=1 // pred_fallthru
      _
    // Predicated region
    $region10: #{tpu_custom_call.1} parent=1 // pred_check
      _
    $region11: #{tpu_custom_call.1} parent=1 // pred_check_branch
      %33 = sbr.rel (0) target = $region13
    $region12: #{tpu_custom_call.1} parent=1 // pred_region
      %34 = dma.done [#allocation3], 128
    $region13: #{tpu_custom_call.1} parent=1 // pred_fallthru
      _
    // Predicated region
    $region14: #{tpu_custom_call.1} parent=1 // pred_check
      _
    $region15: #{tpu_custom_call.1} parent=1 // pred_check_branch
      %36 = sbr.rel (0) target = $region17
    $region16: #{tpu_custom_call.1} parent=1 // pred_region
      %37 = dma.done [#allocation6], 6528
    $region17: #{tpu_custom_call.1} parent=1 // pred_fallthru
      _
    %v38 = vld [vmem:[#allocation2] sm:$0xff]
    %v39 = vld [vmem:[#allocation5] sm:$0xff]
    %v40 = vld [vmem:[#allocation5 + $0x8] sm:$0xff]
    %v41 = vld [vmem:[#allocation5 + $0x10] sm:$0xff]
    %v42 = vld [vmem:[#allocation5 + $0x18] sm:$0xff]
    %v43 = vld [vmem:[#allocation5 + $0x20] sm:$0xff]
    %v44 = vld [vmem:[#allocation5 + $0x28] sm:$0xff]
    %v45 = vld [vmem:[#allocation5 + $0x30] sm:$0xff]
    %v46 = vld [vmem:[#allocation5 + $0x38] sm:$0xff]
    %v47 = vld [vmem:[#allocation5 + $0x40] sm:$0xff]
    %v48 = vld [vmem:[#allocation5 + $0x48] sm:$0xff]
    %v49 = vld [vmem:[#allocation5 + $0x50] sm:$0xff]
    %v50 = vld [vmem:[#allocation5 + $0x58] sm:$0xff]
    %v51 = vld [vmem:[#allocation5 + $0x60] sm:$0xff]
    %v52 = vld [vmem:[#allocation5 + $0x68] sm:$0xff]
    %v53 = vld [vmem:[#allocation5 + $0x70] sm:$0xff]
    %v54 = vld [vmem:[#allocation5 + $0x78] sm:$0xff]
    %v55 = vld [vmem:[#allocation5 + $0x80] sm:$0x1]
    %v56 = vlaneseq
    %v57 = vshrl.u32 %v56, 7
    %v58 = vsub.s32 0, %v57
    %v59 = vrot.slane %v55, %v58
    %60 = vmatprep.subr.mxu0 0.0
    %61 = vmatpush1.msra.mxu0 %v39
    %62 = vmatprep.subr.mxu0 0.0
    %63 = vmatpush1.msra.mxu0 %v40
    %64 = vmatprep.subr.mxu0 0.0
    %65 = vmatpush1.msra.mxu0 %v41
    %66 = vmatprep.subr.mxu0 0.0
    %67 = vmatpush1.msra.mxu0 %v42
    %68 = vmatprep.subr.mxu0 0.0
    %69 = vmatpush1.msra.mxu0 %v43
    %70 = vmatprep.subr.mxu0 0.0
    %71 = vmatpush1.msra.mxu0 %v44
    %72 = vmatprep.subr.mxu0 0.0
    %73 = vmatpush1.msra.mxu0 %v45
    %74 = vmatprep.subr.mxu0 0.0
    %75 = vmatpush1.msra.mxu0 %v46
    %76 = vmatprep.subr.mxu0 0.0
    %77 = vmatpush1.msra.mxu0 %v47
    %78 = vmatprep.subr.mxu0 0.0
    %79 = vmatpush1.msra.mxu0 %v48
    %80 = vmatprep.subr.mxu0 0.0
    %81 = vmatpush1.msra.mxu0 %v49
    %82 = vmatprep.subr.mxu0 0.0
    %83 = vmatpush1.msra.mxu0 %v50
    %84 = vmatprep.subr.mxu0 0.0
    %85 = vmatpush1.msra.mxu0 %v51
    %86 = vmatprep.subr.mxu0 0.0
    %87 = vmatpush1.msra.mxu0 %v52
    %88 = vmatprep.subr.mxu0 0.0
    %89 = vmatpush1.msra.mxu0 %v53
    %90 = vmatprep.subr.mxu0 0.0
    %91 = vmatpush1.msra.mxu0 %v54
    %92 = vmatprep.subr.mxu0 0.0
    %93 = vmatpush1.msra.mxu0 0.0
    %94 = vmatprep.subr.mxu0 0.0
    %95 = vmatpush1.msra.mxu0 0.0
    %96 = vmatprep.subr.mxu0 0.0
    %97 = vmatpush1.msra.mxu0 0.0
    %98 = vmatprep.subr.mxu0 0.0
    %99 = vmatpush1.msra.mxu0 0.0
    %100 = vmatprep.subr.mxu0 0.0
    %101 = vmatpush1.msra.mxu0 0.0
    %102 = vmatprep.subr.mxu0 0.0
    %103 = vmatpush1.msra.mxu0 0.0
    %104 = vmatprep.subr.mxu0 0.0
    %105 = vmatpush1.msra.mxu0 0.0
    %106 = vmatprep.subr.mxu0 0.0
    %107 = vmatpush1.msra.mxu0 0.0
    %108 = vmatprep.subr.mxu0 0.0
    %109 = vmatpush1.msra.mxu0 0.0
    %110 = vmatprep.subr.mxu0 0.0
    %111 = vmatpush1.msra.mxu0 0.0
    %112 = vmatprep.subr.mxu0 0.0
    %113 = vmatpush1.msra.mxu0 0.0
    %114 = vmatprep.subr.mxu0 0.0
    %115 = vmatpush1.msra.mxu0 0.0
    %116 = vmatprep.subr.mxu0 0.0
    %117 = vmatpush1.msra.mxu0 0.0
    %118 = vmatprep.subr.mxu0 0.0
    %119 = vmatpush1.msra.mxu0 0.0
    %120 = vmatprep.subr.mxu0 0.0
    %121 = vmatpush1.msra.mxu0 0.0
    %122 = vmatprep.subr.mxu0 0.0
    %123 = vmatpush1.msra.mxu0 0.0
    %124 = vmatprep.mubr.f32.mxu0 0.0
    %125 = vmatmul.mubr.f32.gmra.mrb[0].mxu0 %v38
    %v126 = vpop.f32.mrb[0].mxu0
    %v127 = vadd.f32 %v59, %v126
    %v128 = vpop.f32.mrb[0].mxu0
    %129 = vdwg.mxu0
    %v130 = vmin.f32 %v127, 20.0
    %v131 = vmul.f32 %v130, 1.442695
    %v132 = vpow.pop %v131
    %v133 = vadd.f32 %v132, 2.0
    %v134 = vmul.f32 %v132, %v133
    %v135 = vmul.f32 %v127, %v134
    %v136 = vadd.f32 %v134, 2.0
    %v137 = vrcp.pop %v136
    %v138 = vmul.f32 %v135, %v137
    %vm139 = vcmp.gt.f32.partialorder %v127, 20.0
    %v140 = vsel %vm139, %v127, %v138
    %v141 = vld [vmem:[#allocation5 + $0x88] sm:$0xff]
    %v142 = vld [vmem:[#allocation5 + $0x90] sm:$0xff]
    %v143 = vld [vmem:[#allocation5 + $0x98] sm:$0xff]
    %v144 = vld [vmem:[#allocation5 + $0xa0] sm:$0xff]
    %v145 = vld [vmem:[#allocation5 + $0xa8] sm:$0xff]
    %v146 = vld [vmem:[#allocation5 + $0xb0] sm:$0xff]
    %v147 = vld [vmem:[#allocation5 + $0xb8] sm:$0xff]
    %v148 = vld [vmem:[#allocation5 + $0xc0] sm:$0xff]
    %v149 = vld [vmem:[#allocation5 + $0xc8] sm:$0xff]
    %v150 = vld [vmem:[#allocation5 + $0xd0] sm:$0xff]
    %v151 = vld [vmem:[#allocation5 + $0xd8] sm:$0xff]
    %v152 = vld [vmem:[#allocation5 + $0xe0] sm:$0xff]
    %v153 = vld [vmem:[#allocation5 + $0xe8] sm:$0xff]
    %v154 = vld [vmem:[#allocation5 + $0xf0] sm:$0xff]
    %v155 = vld [vmem:[#allocation5 + $0xf8] sm:$0xff]
    %v156 = vld [vmem:[#allocation5 + $0x100] sm:$0xff]
    %v157 = vld [vmem:[#allocation5 + $0x108] sm:$0x1]
    %v158 = vlaneseq
    %v159 = vshrl.u32 %v158, 7
    %v160 = vsub.s32 0, %v159
    %v161 = vrot.slane %v157, %v160
    %162 = vmatprep.subr.mxu0 0.0
    %163 = vmatpush1.msra.mxu0 %v141
    %164 = vmatprep.subr.mxu0 0.0
    %165 = vmatpush1.msra.mxu0 %v142
    %166 = vmatprep.subr.mxu0 0.0
    %167 = vmatpush1.msra.mxu0 %v143
    %168 = vmatprep.subr.mxu0 0.0
    %169 = vmatpush1.msra.mxu0 %v144
    %170 = vmatprep.subr.mxu0 0.0
    %171 = vmatpush1.msra.mxu0 %v145
    %172 = vmatprep.subr.mxu0 0.0
    %173 = vmatpush1.msra.mxu0 %v146
    %174 = vmatprep.subr.mxu0 0.0
    %175 = vmatpush1.msra.mxu0 %v147
    %176 = vmatprep.subr.mxu0 0.0
    %177 = vmatpush1.msra.mxu0 %v148
    %178 = vmatprep.subr.mxu0 0.0
    %179 = vmatpush1.msra.mxu0 %v149
    %180 = vmatprep.subr.mxu0 0.0
    %181 = vmatpush1.msra.mxu0 %v150
    %182 = vmatprep.subr.mxu0 0.0
    %183 = vmatpush1.msra.mxu0 %v151
    %184 = vmatprep.subr.mxu0 0.0
    %185 = vmatpush1.msra.mxu0 %v152
    %186 = vmatprep.subr.mxu0 0.0
    %187 = vmatpush1.msra.mxu0 %v153
    %188 = vmatprep.subr.mxu0 0.0
    %189 = vmatpush1.msra.mxu0 %v154
    %190 = vmatprep.subr.mxu0 0.0
    %191 = vmatpush1.msra.mxu0 %v155
    %192 = vmatprep.subr.mxu0 0.0
    %193 = vmatpush1.msra.mxu0 %v156
    %194 = vmatprep.subr.mxu0 0.0
    %195 = vmatpush1.msra.mxu0 0.0
    %196 = vmatprep.subr.mxu0 0.0
    %197 = vmatpush1.msra.mxu0 0.0
    %198 = vmatprep.subr.mxu0 0.0
    %199 = vmatpush1.msra.mxu0 0.0
    %200 = vmatprep.subr.mxu0 0.0
    %201 = vmatpush1.msra.mxu0 0.0
    %202 = vmatprep.subr.mxu0 0.0
    %203 = vmatpush1.msra.mxu0 0.0
    %204 = vmatprep.subr.mxu0 0.0
    %205 = vmatpush1.msra.mxu0 0.0
    %206 = vmatprep.subr.mxu0 0.0
    %207 = vmatpush1.msra.mxu0 0.0
    %208 = vmatprep.subr.mxu0 0.0
    %209 = vmatpush1.msra.mxu0 0.0
    %210 = vmatprep.subr.mxu0 0.0
    %211 = vmatpush1.msra.mxu0 0.0
    %212 = vmatprep.subr.mxu0 0.0
    %213 = vmatpush1.msra.mxu0 0.0
    %214 = vmatprep.subr.mxu0 0.0
    %215 = vmatpush1.msra.mxu0 0.0
    %216 = vmatprep.subr.mxu0 0.0
    %217 = vmatpush1.msra.mxu0 0.0
    %218 = vmatprep.subr.mxu0 0.0
    %219 = vmatpush1.msra.mxu0 0.0
    %220 = vmatprep.subr.mxu0 0.0
    %221 = vmatpush1.msra.mxu0 0.0
    %222 = vmatprep.subr.mxu0 0.0
    %223 = vmatpush1.msra.mxu0 0.0
    %224 = vmatprep.subr.mxu0 0.0
    %225 = vmatpush1.msra.mxu0 0.0
    %226 = vmatprep.mubr.f32.mxu0 0.0
    %227 = vmatmul.mubr.f32.gmra.mrb[0].mxu0 %v140
    %v228 = vpop.f32.mrb[0].mxu0
    %v229 = vadd.f32 %v161, %v228
    %v230 = vpop.f32.mrb[0].mxu0
    %231 = vdwg.mxu0
    %v232 = vmin.f32 %v229, 20.0
    %v233 = vmul.f32 %v232, 1.442695
    %v234 = vpow.pop %v233
    %v235 = vadd.f32 %v234, 2.0
    %v236 = vmul.f32 %v234, %v235
    %v237 = vmul.f32 %v229, %v236
    %v238 = vadd.f32 %v236, 2.0
    %v239 = vrcp.pop %v238
    %v240 = vmul.f32 %v237, %v239
    %vm241 = vcmp.gt.f32.partialorder %v229, 20.0
    %v242 = vsel %vm241, %v229, %v240
    %v243 = vld [vmem:[#allocation5 + $0x110] sm:$0xff]
    %v244 = vld [vmem:[#allocation5 + $0x118] sm:$0xff]
    %v245 = vld [vmem:[#allocation5 + $0x120] sm:$0xff]
    %v246 = vld [vmem:[#allocation5 + $0x128] sm:$0xff]
    %v247 = vld [vmem:[#allocation5 + $0x130] sm:$0xff]
    %v248 = vld [vmem:[#allocation5 + $0x138] sm:$0xff]
    %v249 = vld [vmem:[#allocation5 + $0x140] sm:$0xff]
    %v250 = vld [vmem:[#allocation5 + $0x148] sm:$0xff]
    %v251 = vld [vmem:[#allocation5 + $0x150] sm:$0xff]
    %v252 = vld [vmem:[#allocation5 + $0x158] sm:$0xff]
    %v253 = vld [vmem:[#allocation5 + $0x160] sm:$0xff]
    %v254 = vld [vmem:[#allocation5 + $0x168] sm:$0xff]
    %v255 = vld [vmem:[#allocation5 + $0x170] sm:$0xff]
    %v256 = vld [vmem:[#allocation5 + $0x178] sm:$0xff]
    %v257 = vld [vmem:[#allocation5 + $0x180] sm:$0xff]
    %v258 = vld [vmem:[#allocation5 + $0x188] sm:$0xff]
    %v259 = vld [vmem:[#allocation5 + $0x190] sm:$0x1]
    %v260 = vlaneseq
    %v261 = vshrl.u32 %v260, 7
    %v262 = vsub.s32 0, %v261
    %v263 = vrot.slane %v259, %v262
    %264 = vmatprep.subr.mxu0 0.0
    %265 = vmatpush1.msra.mxu0 %v243
    %266 = vmatprep.subr.mxu0 0.0
    %267 = vmatpush1.msra.mxu0 %v244
    %268 = vmatprep.subr.mxu0 0.0
    %269 = vmatpush1.msra.mxu0 %v245
    %270 = vmatprep.subr.mxu0 0.0
    %271 = vmatpush1.msra.mxu0 %v246
    %272 = vmatprep.subr.mxu0 0.0
    %273 = vmatpush1.msra.mxu0 %v247
    %274 = vmatprep.subr.mxu0 0.0
    %275 = vmatpush1.msra.mxu0 %v248
    %276 = vmatprep.subr.mxu0 0.0
    %277 = vmatpush1.msra.mxu0 %v249
    %278 = vmatprep.subr.mxu0 0.0
    %279 = vmatpush1.msra.mxu0 %v250
    %280 = vmatprep.subr.mxu0 0.0
    %281 = vmatpush1.msra.mxu0 %v251
    %282 = vmatprep.subr.mxu0 0.0
    %283 = vmatpush1.msra.mxu0 %v252
    %284 = vmatprep.subr.mxu0 0.0
    %285 = vmatpush1.msra.mxu0 %v253
    %286 = vmatprep.subr.mxu0 0.0
    %287 = vmatpush1.msra.mxu0 %v254
    %288 = vmatprep.subr.mxu0 0.0
    %289 = vmatpush1.msra.mxu0 %v255
    %290 = vmatprep.subr.mxu0 0.0
    %291 = vmatpush1.msra.mxu0 %v256
    %292 = vmatprep.subr.mxu0 0.0
    %293 = vmatpush1.msra.mxu0 %v257
    %294 = vmatprep.subr.mxu0 0.0
    %295 = vmatpush1.msra.mxu0 %v258
    %296 = vmatprep.subr.mxu0 0.0
    %297 = vmatpush1.msra.mxu0 0.0
    %298 = vmatprep.subr.mxu0 0.0
    %299 = vmatpush1.msra.mxu0 0.0
    %300 = vmatprep.subr.mxu0 0.0
    %301 = vmatpush1.msra.mxu0 0.0
    %302 = vmatprep.subr.mxu0 0.0
    %303 = vmatpush1.msra.mxu0 0.0
    %304 = vmatprep.subr.mxu0 0.0
    %305 = vmatpush1.msra.mxu0 0.0
    %306 = vmatprep.subr.mxu0 0.0
    %307 = vmatpush1.msra.mxu0 0.0
    %308 = vmatprep.subr.mxu0 0.0
    %309 = vmatpush1.msra.mxu0 0.0
    %310 = vmatprep.subr.mxu0 0.0
    %311 = vmatpush1.msra.mxu0 0.0
    %312 = vmatprep.subr.mxu0 0.0
    %313 = vmatpush1.msra.mxu0 0.0
    %314 = vmatprep.subr.mxu0 0.0
    %315 = vmatpush1.msra.mxu0 0.0
    %316 = vmatprep.subr.mxu0 0.0
    %317 = vmatpush1.msra.mxu0 0.0
    %318 = vmatprep.subr.mxu0 0.0
    %319 = vmatpush1.msra.mxu0 0.0
    %320 = vmatprep.subr.mxu0 0.0
    %321 = vmatpush1.msra.mxu0 0.0
    %322 = vmatprep.subr.mxu0 0.0
    %323 = vmatpush1.msra.mxu0 0.0
    %324 = vmatprep.subr.mxu0 0.0
    %325 = vmatpush1.msra.mxu0 0.0
    %326 = vmatprep.subr.mxu0 0.0
    %327 = vmatpush1.msra.mxu0 0.0
    %328 = vmatprep.mubr.f32.mxu0 0.0
    %329 = vmatmul.mubr.f32.gmra.mrb[0].mxu0 %v242
    %v330 = vpop.f32.mrb[0].mxu0
    %v331 = vadd.f32 %v263, %v330
    %v332 = vpop.f32.mrb[0].mxu0
    %333 = vdwg.mxu0
    %v334 = vlaneseq
    %v335 = vand.u32 %v334, 127
    %vm336 = vcmp.lt.s32.totalorder %v335, 2
    %v337 = vsel %vm336, %v331, -inf
    %338 = vmax.xlane.f32.xlu0 %v337
    %v339 = vpop.xlane.xlu0 %338
    %v340 = vsub.f32 %v331, %v339
    %v341 = vsel %vm336, %v340, -inf
    %v342 = vmul.f32 %v341, 1.442695
    %v343 = vpow.pop %v342
    %344 = vadd.xlane.f32.xlu0 %v343
    %v345 = vpop.xlane.xlu0 %344
    %v346 = vlog2.pop %v345
    %v347 = vmul.f32 %v346, 0.6931472
    %v348 = vsub.f32 %v340, %v347
    %349 = vst [vmem:[#allocation7] sm:$0xff] %v348
    // Predicated region
    $region18: #{tpu_custom_call.1} parent=1 // pred_check
      _
    $region19: #{tpu_custom_call.1} parent=1 // pred_check_branch
      %351 = sbr.rel (0) target = $region21
    $region20: #{tpu_custom_call.1} parent=1 // pred_region
      %s353 = ssub.s32 128, 128
      %354 = vsyncadd [#allocation4], %s353
      %s356 = sshll.u32 [#allocation7], 4
      %s357 = int_to_ptr.vmem [resolvable:$true] %s356
      %359 = dma.vmem_to_hbm [thread:$0]  %s357, 128, %s2, [#allocation4]
    $region21: #{tpu_custom_call.1} parent=1 // pred_fallthru
      _
    // Predicated region
    $region22: #{tpu_custom_call.1} parent=1 // pred_check
      _
    $region23: #{tpu_custom_call.1} parent=1 // pred_check_branch
      %361 = sbr.rel (0) target = $region25
    $region24: #{tpu_custom_call.1} parent=1 // pred_region
      %362 = dma.done [#allocation4], 128
    $region25: #{tpu_custom_call.1} parent=1 // pred_fallthru
      _
    %363 = vsyncpa [#allocation3], 1
    %364 = vsyncpa [#allocation6], 1
    %365 = vsyncpa [#allocation4], 1

</llo_original>
